<compile_context>
chip_gen: v6e
topology: v6e:2x2x1
jax: 0.10.0
libtpu: 0.0.40
codegen_flags: <defaults>
</compile_context>

<pallas_src>
import jax
import jax.numpy as jnp
from jax.experimental import pallas as pl
from jax.experimental.pallas import tpu as pltpu


def _mlp_kernel(x_ref, w1_ref, b1_ref, w2_ref, b2_ref, w3_ref, b3_ref,
                w4_ref, b4_ref, o_ref):
    # x tile: (TB, D) bf16; fc1-3 weights bf16; biases f32; MXU accumulation f32.
    h = jnp.dot(x_ref[...], w1_ref[...],
                preferred_element_type=jnp.float32) + b1_ref[...]
    h = jnp.maximum(h, 0.0)

    h = jnp.dot(h.astype(jnp.bfloat16), w2_ref[...],
                preferred_element_type=jnp.float32) + b2_ref[...]
    h = jnp.maximum(h, 0.0)

    h = jnp.dot(h.astype(jnp.bfloat16), w3_ref[...],
                preferred_element_type=jnp.float32) + b3_ref[...]
    h = jnp.maximum(h, 0.0)

    # fc4 (N=1): VPU multiply + lane reduction (rides the XLU) instead of a
    # degenerate MXU matmul.  w4 is already f32 in VMEM (no per-step cast).
    logit = jnp.sum(h * w4_ref[...], axis=-1) + b4_ref[0, 0]     # (TB,)

    # Numerically stable sigmoid: 0.5 * (tanh(x/2) + 1)  (EUP tanh, no overflow).
    prob = 0.5 * (jnp.tanh(0.5 * logit) + 1.0)
    # Single (TB,) -> (1, TB) relayout per grid step, then an unmasked
    # lane-dense store into the (1, B_pad) output row.
    o_ref[...] = prob[None, :].astype(o_ref.dtype)


def _vmem_capacity_bytes():
    """Physical VMEM of the attached TPU (fallback: conservative 64 MiB)."""
    try:
        info = pltpu.get_tpu_info()
        cap = int(getattr(info, "vmem_capacity_bytes", 0) or 0)
        if cap > 0:
            return cap
    except Exception:
        pass
    return 64 * 2**20


def _round_up(x, m):
    return m * ((x + m - 1) // m)


def discriminator_forward(emb, params, *, tb=None):
    """emb: (B, emb_dim) float.  Returns (B,) float32 sigmoid outputs."""
    B, D = emb.shape
    w1, b1, w2, b2, w3, b3, w4, b4 = params
    H = w1.shape[1]  # 2 * emb_dim

    # ---- per-generation VMEM budget & tile selection -------------------------
    vmem_cap = _vmem_capacity_bytes()
    vmem_budget = int(0.8 * vmem_cap)          # ~51 MiB on v7x, ~102 MiB on v5e/v6e
    small_vmem = vmem_cap < 96 * 2**20         # v7x-sized part

    b128 = _round_up(B, 128)

    # Resident weights are SINGLE-buffered (pl.Buffered(1) below):
    # bf16 fc1..fc3 weights + f32 biases + f32 fc4 row + SMEM scalar.
    weight_bytes = (D * H + 2 * H * H) * 2 + 3 * H * 4 + H * 4 + 4

    def total_bytes(tile):
        stream = 2 * (tile * D * 2) + 2 * (tile * 4)   # double-buffered x tile + out row
        inter = 3 * tile * H * 4                       # f32 (TB, H) intermediates
        return weight_bytes + stream + inter

    if tb is None:
        tb = min(512 if small_vmem else 1024, b128)
        # v7x: guarantee >= 2 batch tiles so both TensorCores get work.
        if small_vmem and b128 >= 256 and b128 <= tb:
            tb = max(128, (b128 // 2 // 128) * 128)
        # Shrink the tile if the VMEM estimate (with 2x headroom) busts the budget.
        while tb > 128 and 2 * total_bytes(tb) > vmem_budget:
            tb = max(128, (tb // 2 // 128) * 128)

    if weight_bytes > vmem_budget:
        # TODO(synk): add a contraction-tiled (K-grid, "arbitrary" last axis)
        # fallback that streams fc2/fc3 weight tiles for very large emb_dim on
        # small-VMEM parts (v7x) instead of holding full HxH blocks resident.
        pass

    num_tiles = pl.cdiv(b128, tb)
    b_pad = num_tiles * tb

    # ---- operand prep --------------------------------------------------------
    x = emb.astype(jnp.bfloat16)
    if b_pad != B:
        x = jnp.pad(x, ((0, b_pad - B), (0, 0)))
    w1b = w1.astype(jnp.bfloat16)
    w2b = w2.astype(jnp.bfloat16)
    w3b = w3.astype(jnp.bfloat16)
    w4f = w4.reshape(1, H).astype(jnp.float32)      # f32 row: no per-step cast
    b1f = b1.astype(jnp.float32)
    b2f = b2.astype(jnp.float32)
    b3f = b3.astype(jnp.float32)
    b4f = b4.reshape(1, 1).astype(jnp.float32)      # SMEM scalar

    vmem_limit = int(min(vmem_budget, max(16 * 2**20, 2 * total_bytes(tb))))

    # ---- cost estimate (helps XLA schedule the wrapper cast/pad) -------------
    flops = 2 * b_pad * (D * H + 2 * H * H + H)
    bytes_accessed = ((D * H + 2 * H * H) * 2      # bf16 weights
                      + 4 * H * 4 + 4              # f32 biases + fc4 row
                      + b_pad * D * 2              # bf16 activations in
                      + b_pad * 4)                 # f32 probabilities out
    cost = pl.CostEstimate(flops=int(flops),
                           transcendentals=int(b_pad),
                           bytes_accessed=int(bytes_accessed))

    # Constant-index weights: VMEM-resident, single-buffered (no dead 2nd copy).
    def const(shape):
        return pl.BlockSpec(shape, lambda i: (0, 0), pipeline_mode=pl.Buffered(1))

    out = pl.pallas_call(
        _mlp_kernel,
        out_shape=jax.ShapeDtypeStruct((1, b_pad), jnp.float32),
        grid=(num_tiles,),
        in_specs=[
            pl.BlockSpec((tb, D), lambda i: (i, 0)),            # activations: tiled/streamed
            const((D, H)), const((1, H)),                       # fc1 (resident)
            const((H, H)), const((1, H)),                       # fc2
            const((H, H)), const((1, H)),                       # fc3
            const((1, H)),                                      # fc4 weight row (f32)
            pl.BlockSpec(memory_space=pltpu.MemorySpace.SMEM),  # fc4 bias scalar
        ],
        out_specs=pl.BlockSpec((1, tb), lambda i: (0, i)),      # lane-dense rows
        compiler_params=pltpu.CompilerParams(
            dimension_semantics=("parallel",),
            vmem_limit_bytes=vmem_limit),
        cost_estimate=cost,
    )(x, w1b, b1f, w2b, b2f, w3b, b3f, w4f, b4f)

    return out[0, :B]  # .view(-1) in the PyTorch module


def init_params(key, emb_dim):
    """Deterministic init mimicking PyTorch nn.Linear default U(-1/sqrt(fan_in), ...).
    Weights stored as (in_features, out_features); biases as (1, out_features)."""
    H = 2 * emb_dim
    dims = [(emb_dim, H), (H, H), (H, H), (H, 1)]
    params = []
    for (fin, fout) in dims:
        key, kw, kb = jax.random.split(key, 3)
        bound = 1.0 / (fin ** 0.5)
        w = jax.random.uniform(kw, (fin, fout), jnp.float32, -bound, bound)
        b = jax.random.uniform(kb, (1, fout), jnp.float32, -bound, bound)
        params += [w, b]
    return tuple(params)


def _reference(emb, params):
    """Pure-JAX reference matching the kernel's bf16-operand / f32-accumulate math."""
    w1, b1, w2, b2, w3, b3, w4, b4 = params

    def lin(x, w, b):
        return jnp.dot(x.astype(jnp.bfloat16), w.astype(jnp.bfloat16),
                       preferred_element_type=jnp.float32) + b.astype(jnp.float32)

    h = jnp.maximum(lin(emb, w1, b1), 0.0)
    h = jnp.maximum(lin(h, w2, b2), 0.0)
    h = jnp.maximum(lin(h, w3, b3), 0.0)
    w4_row = w4.reshape(1, -1).astype(jnp.float32)   # fc4 kept f32, as in the kernel
    logit = jnp.sum(h * w4_row, axis=-1) + b4.reshape(()).astype(jnp.float32)
    return 0.5 * (jnp.tanh(0.5 * logit) + 1.0)


if __name__ == "__main__":
    emb_dim = 32
    batch = 8

    key = jax.random.PRNGKey(0)
    key, k_in = jax.random.split(key)
    emb = jax.random.normal(k_in, (batch, emb_dim), jnp.float32)

    params = init_params(key, emb_dim)

    out = discriminator_forward(emb, params)
    out = jax.block_until_ready(out)

    # sanity: shape (batch,), values in [0, 1] from sigmoid, matches reference
    assert out.shape == (batch,)
    assert bool(jnp.all((out >= 0.0) & (out <= 1.0)))
    ref = _reference(emb, params)
    assert bool(jnp.allclose(out, ref, atol=2e-3, rtol=2e-3)), (out, ref)

    print("KERNEL_OK")
</pallas_src>

<mosaic_0001>
module attributes {stable_mosaic.version = 11 : i64} {
  func.func @_mlp_kernel(%arg0: i32, %arg1: memref<128x32xbf16, #tpu.memory_space<vmem>>, %arg2: memref<32x64xbf16, #tpu.memory_space<vmem>>, %arg3: memref<1x64xf32, #tpu.memory_space<vmem>>, %arg4: memref<64x64xbf16, #tpu.memory_space<vmem>>, %arg5: memref<1x64xf32, #tpu.memory_space<vmem>>, %arg6: memref<64x64xbf16, #tpu.memory_space<vmem>>, %arg7: memref<1x64xf32, #tpu.memory_space<vmem>>, %arg8: memref<1x64xf32, #tpu.memory_space<vmem>>, %arg9: memref<1x1xf32, #tpu.memory_space<smem>>, %arg10: memref<1x128xf32, #tpu.memory_space<vmem>>) attributes {dimension_semantics = [#tpu.dimension_semantics<parallel>], iteration_bounds = array<i64: 1>, scalar_prefetch = 0 : i64, scratch_operands = 0 : i64, tpu.core_type = #tpu.core_type<tc>, window_params = [{transform_indices = @transform_0, window_bounds = array<i64: 128, 32>}, {pipeline_mode = #tpu.pipeline_mode<synchronous>, transform_indices = @transform_1, window_bounds = array<i64: 32, 64>}, {pipeline_mode = #tpu.pipeline_mode<synchronous>, transform_indices = @transform_2, window_bounds = array<i64: 1, 64>}, {pipeline_mode = #tpu.pipeline_mode<synchronous>, transform_indices = @transform_3, window_bounds = array<i64: 64, 64>}, {pipeline_mode = #tpu.pipeline_mode<synchronous>, transform_indices = @transform_4, window_bounds = array<i64: 1, 64>}, {pipeline_mode = #tpu.pipeline_mode<synchronous>, transform_indices = @transform_5, window_bounds = array<i64: 64, 64>}, {pipeline_mode = #tpu.pipeline_mode<synchronous>, transform_indices = @transform_6, window_bounds = array<i64: 1, 64>}, {pipeline_mode = #tpu.pipeline_mode<synchronous>, transform_indices = @transform_7, window_bounds = array<i64: 1, 64>}, {transform_indices = @transform_8, window_bounds = array<i64: 1, 1>}, {transform_indices = @transform_9, window_bounds = array<i64: 1, 128>}]} {
    %c0 = arith.constant 0 : index
    %c0_0 = arith.constant 0 : index
    %0 = vector.load %arg1[%c0, %c0_0] : memref<128x32xbf16, #tpu.memory_space<vmem>>, vector<128x32xbf16>
    %c0_1 = arith.constant 0 : index
    %c0_2 = arith.constant 0 : index
    %1 = vector.load %arg2[%c0_1, %c0_2] : memref<32x64xbf16, #tpu.memory_space<vmem>>, vector<32x64xbf16>
    %cst = arith.constant dense<0.000000e+00> : vector<128x64xf32>
    %2 = tpu.matmul %0, %1, %cst {dimension_numbers = #tpu.dot_dimension_numbers<[1], [0], [0], [1], [0, 0, 1, 1], [], []>} : vector<128x32xbf16>, vector<32x64xbf16>, vector<128x64xf32> -> vector<128x64xf32>
    %c0_3 = arith.constant 0 : index
    %c0_4 = arith.constant 0 : index
    %3 = vector.load %arg3[%c0_3, %c0_4] : memref<1x64xf32, #tpu.memory_space<vmem>>, vector<1x64xf32>
    %4 = vector.broadcast %3 : vector<1x64xf32> to vector<128x64xf32>
    %5 = arith.addf %2, %4 : vector<128x64xf32>
    %cst_5 = arith.constant 0.000000e+00 : f32
    %6 = vector.broadcast %cst_5 : f32 to vector<128x64xf32>
    %7 = arith.maximumf %5, %6 : vector<128x64xf32>
    %8 = arith.truncf %7 : vector<128x64xf32> to vector<128x64xbf16>
    %c0_6 = arith.constant 0 : index
    %c0_7 = arith.constant 0 : index
    %9 = vector.load %arg4[%c0_6, %c0_7] : memref<64x64xbf16, #tpu.memory_space<vmem>>, vector<64x64xbf16>
    %cst_8 = arith.constant dense<0.000000e+00> : vector<128x64xf32>
    %10 = tpu.matmul %8, %9, %cst_8 {dimension_numbers = #tpu.dot_dimension_numbers<[1], [0], [0], [1], [0, 0, 1, 1], [], []>} : vector<128x64xbf16>, vector<64x64xbf16>, vector<128x64xf32> -> vector<128x64xf32>
    %c0_9 = arith.constant 0 : index
    %c0_10 = arith.constant 0 : index
    %11 = vector.load %arg5[%c0_9, %c0_10] : memref<1x64xf32, #tpu.memory_space<vmem>>, vector<1x64xf32>
    %12 = vector.broadcast %11 : vector<1x64xf32> to vector<128x64xf32>
    %13 = arith.addf %10, %12 : vector<128x64xf32>
    %cst_11 = arith.constant 0.000000e+00 : f32
    %14 = vector.broadcast %cst_11 : f32 to vector<128x64xf32>
    %15 = arith.maximumf %13, %14 : vector<128x64xf32>
    %16 = arith.truncf %15 : vector<128x64xf32> to vector<128x64xbf16>
    %c0_12 = arith.constant 0 : index
    %c0_13 = arith.constant 0 : index
    %17 = vector.load %arg6[%c0_12, %c0_13] : memref<64x64xbf16, #tpu.memory_space<vmem>>, vector<64x64xbf16>
    %cst_14 = arith.constant dense<0.000000e+00> : vector<128x64xf32>
    %18 = tpu.matmul %16, %17, %cst_14 {dimension_numbers = #tpu.dot_dimension_numbers<[1], [0], [0], [1], [0, 0, 1, 1], [], []>} : vector<128x64xbf16>, vector<64x64xbf16>, vector<128x64xf32> -> vector<128x64xf32>
    %c0_15 = arith.constant 0 : index
    %c0_16 = arith.constant 0 : index
    %19 = vector.load %arg7[%c0_15, %c0_16] : memref<1x64xf32, #tpu.memory_space<vmem>>, vector<1x64xf32>
    %20 = vector.broadcast %19 : vector<1x64xf32> to vector<128x64xf32>
    %21 = arith.addf %18, %20 : vector<128x64xf32>
    %cst_17 = arith.constant 0.000000e+00 : f32
    %22 = vector.broadcast %cst_17 : f32 to vector<128x64xf32>
    %23 = arith.maximumf %21, %22 : vector<128x64xf32>
    %c0_18 = arith.constant 0 : index
    %c0_19 = arith.constant 0 : index
    %24 = vector.load %arg8[%c0_18, %c0_19] : memref<1x64xf32, #tpu.memory_space<vmem>>, vector<1x64xf32>
    %25 = vector.broadcast %24 : vector<1x64xf32> to vector<128x64xf32>
    %26 = arith.mulf %23, %25 : vector<128x64xf32>
    %cst_20 = arith.constant dense<0.000000e+00> : vector<128xf32>
    %27 = vector.multi_reduction <add>, %26, %cst_20 [1] : vector<128x64xf32> to vector<128xf32>
    %c0_21 = arith.constant 0 : index
    %c0_22 = arith.constant 0 : index
    %28 = memref.load %arg9[%c0_21, %c0_22] : memref<1x1xf32, #tpu.memory_space<smem>>
    %29 = vector.broadcast %28 : f32 to vector<128xf32>
    %30 = arith.addf %27, %29 : vector<128xf32>
    %cst_23 = arith.constant 5.000000e-01 : f32
    %31 = vector.broadcast %cst_23 : f32 to vector<128xf32>
    %32 = arith.mulf %31, %30 : vector<128xf32>
    %33 = math.tanh %32 : vector<128xf32>
    %cst_24 = arith.constant 1.000000e+00 : f32
    %34 = vector.broadcast %cst_24 : f32 to vector<128xf32>
    %35 = arith.addf %33, %34 : vector<128xf32>
    %cst_25 = arith.constant 5.000000e-01 : f32
    %36 = vector.broadcast %cst_25 : f32 to vector<128xf32>
    %37 = arith.mulf %36, %35 : vector<128xf32>
    %38 = vector.shape_cast %37 : vector<128xf32> to vector<1x128xf32>
    %c0_26 = arith.constant 0 : index
    %c0_27 = arith.constant 0 : index
    %39 = vector.load %arg10[%c0_26, %c0_27] : memref<1x128xf32, #tpu.memory_space<vmem>>, vector<1x128xf32>
    tpu.vector_store %arg10[%c0_26, %c0_27], %38 {strides = array<i32>} : memref<1x128xf32, #tpu.memory_space<vmem>>, vector<1x128xf32>,
    return
  }
  func.func @transform_0(%arg0: i32) -> (i32, i32) {
    %c0_i32 = arith.constant 0 : i32
    %c0_i32_0 = arith.constant 0 : i32
    return %arg0, %c0_i32 : i32, i32
  }
  func.func @transform_1(%arg0: i32) -> (i32, i32) {
    %c0_i32 = arith.constant 0 : i32
    %c0_i32_0 = arith.constant 0 : i32
    %c0_i32_1 = arith.constant 0 : i32
    return %c0_i32, %c0_i32_0 : i32, i32
  }
  func.func @transform_2(%arg0: i32) -> (i32, i32) {
    %c0_i32 = arith.constant 0 : i32
    %c0_i32_0 = arith.constant 0 : i32
    %c0_i32_1 = arith.constant 0 : i32
    return %c0_i32, %c0_i32_0 : i32, i32
  }
  func.func @transform_3(%arg0: i32) -> (i32, i32) {
    %c0_i32 = arith.constant 0 : i32
    %c0_i32_0 = arith.constant 0 : i32
    %c0_i32_1 = arith.constant 0 : i32
    return %c0_i32, %c0_i32_0 : i32, i32
  }
  func.func @transform_4(%arg0: i32) -> (i32, i32) {
    %c0_i32 = arith.constant 0 : i32
    %c0_i32_0 = arith.constant 0 : i32
    %c0_i32_1 = arith.constant 0 : i32
    return %c0_i32, %c0_i32_0 : i32, i32
  }
  func.func @transform_5(%arg0: i32) -> (i32, i32) {
    %c0_i32 = arith.constant 0 : i32
    %c0_i32_0 = arith.constant 0 : i32
    %c0_i32_1 = arith.constant 0 : i32
    return %c0_i32, %c0_i32_0 : i32, i32
  }
  func.func @transform_6(%arg0: i32) -> (i32, i32) {
    %c0_i32 = arith.constant 0 : i32
    %c0_i32_0 = arith.constant 0 : i32
    %c0_i32_1 = arith.constant 0 : i32
    return %c0_i32, %c0_i32_0 : i32, i32
  }
  func.func @transform_7(%arg0: i32) -> (i32, i32) {
    %c0_i32 = arith.constant 0 : i32
    %c0_i32_0 = arith.constant 0 : i32
    %c0_i32_1 = arith.constant 0 : i32
    return %c0_i32, %c0_i32_0 : i32, i32
  }
  func.func @transform_8(%arg0: i32) -> (i32, i32) {
    %c0_i32 = arith.constant 0 : i32
    %c0_i32_0 = arith.constant 0 : i32
    %c0_i32_1 = arith.constant 0 : i32
    return %c0_i32, %c0_i32_0 : i32, i32
  }
  func.func @transform_9(%arg0: i32) -> (i32, i32) {
    %c0_i32 = arith.constant 0 : i32
    %c0_i32_0 = arith.constant 0 : i32
    return %c0_i32, %arg0 : i32, i32
  }
}

</mosaic_0001>

<llo_original>
// kernel: tpu_custom_call.1
$region0: #{tpu_custom_call.1}
  #allocation0 [shape = 'u32[]', space=smem, size = 0x4, offset = 0x4, fixed_abs, tag = 'smem constant byte address 0x4 - core index']
  #allocation1 [shape = 'u32[144,128]{1,0:T(1,128)}', space=vmem, size = 0x12000, scoped, tag = 'internal scratch']
  #allocation2 [shape = 'f32[1,1]{1,0:T(1,128)S(6)}', space=smem, size = 0x200, scoped, tag = 'scoped memory for tpu_custom_call.1']
  %s0 = inlined_call_operand.vmem [shape: bf16[128,32], index: 0, kind: input, shape index: {}]
  %s1 = inlined_call_operand.vmem [shape: bf16[32,64], index: 1, kind: input, shape index: {}]
  %s2 = inlined_call_operand.vmem [shape: f32[1,64], index: 2, kind: input, shape index: {}]
  %s3 = inlined_call_operand.vmem [shape: bf16[64,64], index: 3, kind: input, shape index: {}]
  %s4 = inlined_call_operand.vmem [shape: f32[1,64], index: 4, kind: input, shape index: {}]
  %s5 = inlined_call_operand.vmem [shape: bf16[64,64], index: 5, kind: input, shape index: {}]
  %s6 = inlined_call_operand.vmem [shape: f32[1,64], index: 6, kind: input, shape index: {}]
  %s7 = inlined_call_operand.vmem [shape: f32[1,64], index: 7, kind: input, shape index: {}]
  %s8 = inlined_call_operand.<no memory space> [shape: f32[1,1], index: 8, kind: input, shape index: {}]
  %s9 = inlined_call_operand.hbm [shape: f32[1,128], index: 9, kind: output, shape index: {}]
  %s10 = sld [smem:[#allocation0]]
  $region46: #{tpu_custom_call.1} parent=0
    _
  %s12 = ssub.s32 1, %s10
  %s13 = scalar_select 0, %s12, %s10
  %14 = sst [smem:[#allocation2]] %s8
  $region1: #{tpu_custom_call.1} parent=0
    #allocation3 [shape = 'u8[512]{0}', space=vmem, size = 0x400, scoped, tag = 'output window, operand 0, single buffered']
    #allocation4 [shape = 's32[1]{0}', space=sflag, size = 0x4, scoped, tag = 'scoped memory for tpu_custom_call.1']
    %15 = vsyncpa [#allocation4], 0
    // Predicated region
    $region2: #{tpu_custom_call.1} parent=1 // pred_check
      _
    $region3: #{tpu_custom_call.1} parent=1 // pred_check_branch
      %17 = sbr.rel (0) target = $region5
    $region4: #{tpu_custom_call.1} parent=1 // pred_region
      _
    $region5: #{tpu_custom_call.1} parent=1 // pred_fallthru
      _
    // Predicated region
    $region6: #{tpu_custom_call.1} parent=1 // pred_check
      _
    $region7: #{tpu_custom_call.1} parent=1 // pred_check_branch
      %19 = sbr.rel (0) target = $region9
    $region8: #{tpu_custom_call.1} parent=1 // pred_region
      _
    $region9: #{tpu_custom_call.1} parent=1 // pred_fallthru
      _
    // Predicated region
    $region10: #{tpu_custom_call.1} parent=1 // pred_check
      _
    $region11: #{tpu_custom_call.1} parent=1 // pred_check_branch
      %21 = sbr.rel (0) target = $region13
    $region12: #{tpu_custom_call.1} parent=1 // pred_region
      _
    $region13: #{tpu_custom_call.1} parent=1 // pred_fallthru
      _
    // Predicated region
    $region14: #{tpu_custom_call.1} parent=1 // pred_check
      _
    $region15: #{tpu_custom_call.1} parent=1 // pred_check_branch
      %23 = sbr.rel (0) target = $region17
    $region16: #{tpu_custom_call.1} parent=1 // pred_region
      _
    $region17: #{tpu_custom_call.1} parent=1 // pred_fallthru
      _
    // Predicated region
    $region18: #{tpu_custom_call.1} parent=1 // pred_check
      _
    $region19: #{tpu_custom_call.1} parent=1 // pred_check_branch
      %25 = sbr.rel (0) target = $region21
    $region20: #{tpu_custom_call.1} parent=1 // pred_region
      _
    $region21: #{tpu_custom_call.1} parent=1 // pred_fallthru
      _
    // Predicated region
    $region22: #{tpu_custom_call.1} parent=1 // pred_check
      _
    $region23: #{tpu_custom_call.1} parent=1 // pred_check_branch
      %27 = sbr.rel (0) target = $region25
    $region24: #{tpu_custom_call.1} parent=1 // pred_region
      _
    $region25: #{tpu_custom_call.1} parent=1 // pred_fallthru
      _
    // Predicated region
    $region26: #{tpu_custom_call.1} parent=1 // pred_check
      _
    $region27: #{tpu_custom_call.1} parent=1 // pred_check_branch
      %29 = sbr.rel (0) target = $region29
    $region28: #{tpu_custom_call.1} parent=1 // pred_region
      _
    $region29: #{tpu_custom_call.1} parent=1 // pred_fallthru
      _
    // Predicated region
    $region30: #{tpu_custom_call.1} parent=1 // pred_check
      _
    $region31: #{tpu_custom_call.1} parent=1 // pred_check_branch
      %31 = sbr.rel (0) target = $region33
    $region32: #{tpu_custom_call.1} parent=1 // pred_region
      _
    $region33: #{tpu_custom_call.1} parent=1 // pred_fallthru
      _
    // Predicated region
    $region34: #{tpu_custom_call.1} parent=1 // pred_check
      _
    $region35: #{tpu_custom_call.1} parent=1 // pred_check_branch
      %33 = sbr.rel (0) target = $region37
    $region36: #{tpu_custom_call.1} parent=1 // pred_region
      _
    $region37: #{tpu_custom_call.1} parent=1 // pred_fallthru
      _
    %v35 = vld [vmem:[%s0] sm:$0xf]
    %v36 = vld [vmem:[%s0 + $0x4] sm:$0xf]
    %v37 = vld [vmem:[%s0 + $0x8] sm:$0xf]
    %v38 = vld [vmem:[%s0 + $0xc] sm:$0xf]
    %v39 = vld [vmem:[%s0 + $0x10] sm:$0xf]
    %v40 = vld [vmem:[%s0 + $0x14] sm:$0xf]
    %v41 = vld [vmem:[%s0 + $0x18] sm:$0xf]
    %v42 = vld [vmem:[%s0 + $0x1c] sm:$0xf]
    %v43 = vld [vmem:[%s0 + $0x20] sm:$0xf]
    %v44 = vld [vmem:[%s0 + $0x24] sm:$0xf]
    %v45 = vld [vmem:[%s0 + $0x28] sm:$0xf]
    %v46 = vld [vmem:[%s0 + $0x2c] sm:$0xf]
    %v47 = vld [vmem:[%s0 + $0x30] sm:$0xf]
    %v48 = vld [vmem:[%s0 + $0x34] sm:$0xf]
    %v49 = vld [vmem:[%s0 + $0x38] sm:$0xf]
    %v50 = vld [vmem:[%s0 + $0x3c] sm:$0xf]
    %v51 = vld [vmem:[%s1] sm:$0xf]
    %v52 = vld [vmem:[%s1 + $0x4] sm:$0xf]
    %v53 = vld [vmem:[%s1 + $0x8] sm:$0xf]
    %v54 = vld [vmem:[%s1 + $0xc] sm:$0xf]
    %v55 = vld [vmem:[%s2] sm:$0x1]
    %v57 = vlaneseq
    %v58 = vshrl.u32 %v57, 7
    %v59 = vsub.s32 0, %v58
    %v60 = vrot.slane %v55, %v59
    %v78 = vunpack.c.l.b16 %v35
    %v79 = vunpack.c.l.b16 %v36
    %v80 = vunpack.c.l.b16 %v37
    %v81 = vunpack.c.l.b16 %v38
    %v82 = vunpack.c.l.b16 %v39
    %v83 = vunpack.c.l.b16 %v40
    %v84 = vunpack.c.l.b16 %v41
    %v85 = vunpack.c.l.b16 %v42
    %v86 = vunpack.c.l.b16 %v43
    %v87 = vunpack.c.l.b16 %v44
    %v88 = vunpack.c.l.b16 %v45
    %v89 = vunpack.c.l.b16 %v46
    %v90 = vunpack.c.l.b16 %v47
    %v91 = vunpack.c.l.b16 %v48
    %v92 = vunpack.c.l.b16 %v49
    %v93 = vunpack.c.l.b16 %v50
    %v94 = vpack.c.b16 %v79, %v78
    %v95 = vpack.c.b16 %v81, %v80
    %v96 = vpack.c.b16 %v83, %v82
    %v97 = vpack.c.b16 %v85, %v84
    %v98 = vpack.c.b16 %v87, %v86
    %v99 = vpack.c.b16 %v89, %v88
    %v100 = vpack.c.b16 %v91, %v90
    %v101 = vpack.c.b16 %v93, %v92
    %v106 = vunpack.c.l.b16 %v51
    %v107 = vunpack.c.l.b16 %v52
    %v108 = vunpack.c.l.b16 %v53
    %v109 = vunpack.c.l.b16 %v54
    %v110 = vpack.c.b16 %v107, %v106
    %v111 = vpack.c.b16 %v109, %v108
    %vm114 = vcmask 261120
    %v116 = vsel %vm114, %v94, 0
    %v119 = vsel %vm114, %v95, 0
    %v122 = vsel %vm114, %v96, 0
    %v125 = vsel %vm114, %v97, 0
    %v128 = vsel %vm114, %v98, 0
    %v131 = vsel %vm114, %v99, 0
    %v134 = vsel %vm114, %v100, 0
    %v137 = vsel %vm114, %v101, 0
    %139 = vmatprep.subr.bf16.mxu0 0
    %140 = vmatpush1.bf16.msra.mxu0 0
    %141 = vmatprep.subr.bf16.mxu0 0
    %142 = vmatpush1.bf16.msra.mxu0 0
    %143 = vmatprep.subr.bf16.mxu0 0
    %144 = vmatpush1.bf16.msra.mxu0 0
    %145 = vmatprep.subr.bf16.mxu0 0
    %146 = vmatpush1.bf16.msra.mxu0 0
    %147 = vmatprep.subr.bf16.mxu0 0
    %148 = vmatpush1.bf16.msra.mxu0 0
    %149 = vmatprep.subr.bf16.mxu0 0
    %150 = vmatpush1.bf16.msra.mxu0 0
    %151 = vmatprep.subr.bf16.mxu0 0
    %152 = vmatpush1.bf16.msra.mxu0 %v111
    %153 = vmatprep.subr.bf16.mxu0 0
    %154 = vmatpush1.bf16.msra.mxu0 %v110
    %155 = vmatprep.subr.bf16.mxu0 0
    %156 = vmatpush2.bf16.msra.mxu0 0
    %157 = vmatprep.subr.bf16.mxu0 0
    %158 = vmatpush2.bf16.msra.mxu0 0
    %159 = vmatprep.subr.bf16.mxu0 0
    %160 = vmatpush2.bf16.msra.mxu0 0
    %161 = vmatprep.subr.bf16.mxu0 0
    %162 = vmatpush2.bf16.msra.mxu0 0
    %163 = vmatprep.subr.bf16.mxu0 0
    %164 = vmatpush2.bf16.msra.mxu0 0
    %165 = vmatprep.subr.bf16.mxu0 0
    %166 = vmatpush2.bf16.msra.mxu0 0
    %167 = vmatprep.subr.bf16.mxu0 0
    %168 = vmatpush2.bf16.msra.mxu0 0
    %169 = vmatprep.subr.bf16.mxu0 0
    %170 = vmatpush2.bf16.msra.mxu0 0
    %171 = vmatprep.mubr.bf16.mxu0 0
    %172 = vmatmul.mubr.bf16.gmra.mxu0 %v116
    %v173 = vpop.f32.mrf.mxu0
    %v174 = vadd.f32 %v60, %v173
    %v175 = vpop.f32.mrf.mxu0
    %v176 = vpop.f32.mrf.mxu0
    %v177 = vadd.f32 %v60, %v176
    %v178 = vpop.f32.mrf.mxu0
    %179 = vmatprep.mubr.bf16.mxu0 0
    %180 = vmatmul.mubr.bf16.gmra.mxu0 %v119
    %v181 = vpop.f32.mrf.mxu0
    %v182 = vadd.f32 %v60, %v181
    %v183 = vpop.f32.mrf.mxu0
    %v184 = vpop.f32.mrf.mxu0
    %v185 = vadd.f32 %v60, %v184
    %v186 = vpop.f32.mrf.mxu0
    %187 = vmatprep.mubr.bf16.mxu0 0
    %188 = vmatmul.mubr.bf16.gmra.mxu0 %v122
    %v189 = vpop.f32.mrf.mxu0
    %v190 = vadd.f32 %v60, %v189
    %v191 = vpop.f32.mrf.mxu0
    %v192 = vpop.f32.mrf.mxu0
    %v193 = vadd.f32 %v60, %v192
    %v194 = vpop.f32.mrf.mxu0
    %195 = vmatprep.mubr.bf16.mxu0 0
    %196 = vmatmul.mubr.bf16.gmra.mxu0 %v125
    %v197 = vpop.f32.mrf.mxu0
    %v198 = vadd.f32 %v60, %v197
    %v199 = vpop.f32.mrf.mxu0
    %v200 = vpop.f32.mrf.mxu0
    %v201 = vadd.f32 %v60, %v200
    %v202 = vpop.f32.mrf.mxu0
    %203 = vmatprep.mubr.bf16.mxu0 0
    %204 = vmatmul.mubr.bf16.gmra.mxu0 %v128
    %v205 = vpop.f32.mrf.mxu0
    %v206 = vadd.f32 %v60, %v205
    %v207 = vpop.f32.mrf.mxu0
    %v208 = vpop.f32.mrf.mxu0
    %v209 = vadd.f32 %v60, %v208
    %v210 = vpop.f32.mrf.mxu0
    %211 = vmatprep.mubr.bf16.mxu0 0
    %212 = vmatmul.mubr.bf16.gmra.mxu0 %v131
    %v213 = vpop.f32.mrf.mxu0
    %v214 = vadd.f32 %v60, %v213
    %v215 = vpop.f32.mrf.mxu0
    %v216 = vpop.f32.mrf.mxu0
    %v217 = vadd.f32 %v60, %v216
    %v218 = vpop.f32.mrf.mxu0
    %219 = vmatprep.mubr.bf16.mxu0 0
    %220 = vmatmul.mubr.bf16.gmra.mxu0 %v134
    %v221 = vpop.f32.mrf.mxu0
    %v222 = vadd.f32 %v60, %v221
    %v223 = vpop.f32.mrf.mxu0
    %v224 = vpop.f32.mrf.mxu0
    %v225 = vadd.f32 %v60, %v224
    %v226 = vpop.f32.mrf.mxu0
    %227 = vmatprep.mubr.bf16.mxu0 0
    %228 = vmatmul.mubr.bf16.gmra.mxu0 %v137
    %v229 = vpop.f32.mrf.mxu0
    %v230 = vadd.f32 %v60, %v229
    %v231 = vpop.f32.mrf.mxu0
    %v232 = vpop.f32.mrf.mxu0
    %v233 = vadd.f32 %v60, %v232
    %v234 = vpop.f32.mrf.mxu0
    %235 = vdwg.mxu0
    %v236 = vmax.f32 %v174, 0.0
    %v237 = vmax.f32 %v177, 0.0
    %v238 = vmax.f32 %v182, 0.0
    %v239 = vmax.f32 %v185, 0.0
    %v240 = vmax.f32 %v190, 0.0
    %v241 = vmax.f32 %v193, 0.0
    %v242 = vmax.f32 %v198, 0.0
    %v243 = vmax.f32 %v201, 0.0
    %v244 = vmax.f32 %v206, 0.0
    %v245 = vmax.f32 %v209, 0.0
    %v246 = vmax.f32 %v214, 0.0
    %v247 = vmax.f32 %v217, 0.0
    %v248 = vmax.f32 %v222, 0.0
    %v249 = vmax.f32 %v225, 0.0
    %v250 = vmax.f32 %v230, 0.0
    %v251 = vmax.f32 %v233, 0.0
    %v252 = vpack.c.bf16 %v237, %v236
    %v253 = vpack.c.bf16 %v239, %v238
    %v254 = vpack.c.bf16 %v241, %v240
    %v255 = vpack.c.bf16 %v243, %v242
    %v256 = vpack.c.bf16 %v245, %v244
    %v257 = vpack.c.bf16 %v247, %v246
    %v258 = vpack.c.bf16 %v249, %v248
    %v259 = vpack.c.bf16 %v251, %v250
    %v260 = vld [vmem:[%s3] sm:$0xf]
    %v261 = vld [vmem:[%s3 + $0x4] sm:$0xf]
    %v262 = vld [vmem:[%s3 + $0x8] sm:$0xf]
    %v263 = vld [vmem:[%s3 + $0xc] sm:$0xf]
    %v264 = vld [vmem:[%s3 + $0x10] sm:$0xf]
    %v265 = vld [vmem:[%s3 + $0x14] sm:$0xf]
    %v266 = vld [vmem:[%s3 + $0x18] sm:$0xf]
    %v267 = vld [vmem:[%s3 + $0x1c] sm:$0xf]
    %v268 = vld [vmem:[%s4] sm:$0x1]
    %v270 = vlaneseq
    %v271 = vshrl.u32 %v270, 7
    %v272 = vsub.s32 0, %v271
    %v273 = vrot.slane %v268, %v272
    %v283 = vunpack.c.l.b16 %v260
    %v284 = vunpack.c.l.b16 %v261
    %v285 = vunpack.c.l.b16 %v262
    %v286 = vunpack.c.l.b16 %v263
    %v287 = vunpack.c.l.b16 %v264
    %v288 = vunpack.c.l.b16 %v265
    %v289 = vunpack.c.l.b16 %v266
    %v290 = vunpack.c.l.b16 %v267
    %v291 = vpack.c.b16 %v284, %v283
    %v292 = vpack.c.b16 %v286, %v285
    %v293 = vpack.c.b16 %v288, %v287
    %v294 = vpack.c.b16 %v290, %v289
    %vm299 = vcmask 523264
    %v301 = vsel %vm299, %v252, 0
    %v304 = vsel %vm299, %v253, 0
    %v307 = vsel %vm299, %v254, 0
    %v310 = vsel %vm299, %v255, 0
    %v313 = vsel %vm299, %v256, 0
    %v316 = vsel %vm299, %v257, 0
    %v319 = vsel %vm299, %v258, 0
    %v322 = vsel %vm299, %v259, 0
    %324 = vmatprep.subr.bf16.mxu0 0
    %325 = vmatpush1.bf16.msra.mxu0 0
    %326 = vmatprep.subr.bf16.mxu0 0
    %327 = vmatpush1.bf16.msra.mxu0 0
    %328 = vmatprep.subr.bf16.mxu0 0
    %329 = vmatpush1.bf16.msra.mxu0 0
    %330 = vmatprep.subr.bf16.mxu0 0
    %331 = vmatpush1.bf16.msra.mxu0 0
    %332 = vmatprep.subr.bf16.mxu0 0
    %333 = vmatpush1.bf16.msra.mxu0 %v294
    %334 = vmatprep.subr.bf16.mxu0 0
    %335 = vmatpush1.bf16.msra.mxu0 %v293
    %336 = vmatprep.subr.bf16.mxu0 0
    %337 = vmatpush1.bf16.msra.mxu0 %v292
    %338 = vmatprep.subr.bf16.mxu0 0
    %339 = vmatpush1.bf16.msra.mxu0 %v291
    %340 = vmatprep.subr.bf16.mxu0 0
    %341 = vmatpush2.bf16.msra.mxu0 0
    %342 = vmatprep.subr.bf16.mxu0 0
    %343 = vmatpush2.bf16.msra.mxu0 0
    %344 = vmatprep.subr.bf16.mxu0 0
    %345 = vmatpush2.bf16.msra.mxu0 0
    %346 = vmatprep.subr.bf16.mxu0 0
    %347 = vmatpush2.bf16.msra.mxu0 0
    %348 = vmatprep.subr.bf16.mxu0 0
    %349 = vmatpush2.bf16.msra.mxu0 0
    %350 = vmatprep.subr.bf16.mxu0 0
    %351 = vmatpush2.bf16.msra.mxu0 0
    %352 = vmatprep.subr.bf16.mxu0 0
    %353 = vmatpush2.bf16.msra.mxu0 0
    %354 = vmatprep.subr.bf16.mxu0 0
    %355 = vmatpush2.bf16.msra.mxu0 0
    %356 = vmatprep.mubr.bf16.mxu0 0
    %357 = vmatmul.mubr.bf16.gmra.mxu0 %v301
    %v358 = vpop.f32.mrf.mxu0
    %v359 = vadd.f32 %v273, %v358
    %v360 = vpop.f32.mrf.mxu0
    %v361 = vpop.f32.mrf.mxu0
    %v362 = vadd.f32 %v273, %v361
    %v363 = vpop.f32.mrf.mxu0
    %364 = vmatprep.mubr.bf16.mxu0 0
    %365 = vmatmul.mubr.bf16.gmra.mxu0 %v304
    %v366 = vpop.f32.mrf.mxu0
    %v367 = vadd.f32 %v273, %v366
    %v368 = vpop.f32.mrf.mxu0
    %v369 = vpop.f32.mrf.mxu0
    %v370 = vadd.f32 %v273, %v369
    %v371 = vpop.f32.mrf.mxu0
    %372 = vmatprep.mubr.bf16.mxu0 0
    %373 = vmatmul.mubr.bf16.gmra.mxu0 %v307
    %v374 = vpop.f32.mrf.mxu0
    %v375 = vadd.f32 %v273, %v374
    %v376 = vpop.f32.mrf.mxu0
    %v377 = vpop.f32.mrf.mxu0
    %v378 = vadd.f32 %v273, %v377
    %v379 = vpop.f32.mrf.mxu0
    %380 = vmatprep.mubr.bf16.mxu0 0
    %381 = vmatmul.mubr.bf16.gmra.mxu0 %v310
    %v382 = vpop.f32.mrf.mxu0
    %v383 = vadd.f32 %v273, %v382
    %v384 = vpop.f32.mrf.mxu0
    %v385 = vpop.f32.mrf.mxu0
    %v386 = vadd.f32 %v273, %v385
    %v387 = vpop.f32.mrf.mxu0
    %388 = vmatprep.mubr.bf16.mxu0 0
    %389 = vmatmul.mubr.bf16.gmra.mxu0 %v313
    %v390 = vpop.f32.mrf.mxu0
    %v391 = vadd.f32 %v273, %v390
    %v392 = vpop.f32.mrf.mxu0
    %v393 = vpop.f32.mrf.mxu0
    %v394 = vadd.f32 %v273, %v393
    %v395 = vpop.f32.mrf.mxu0
    %396 = vmatprep.mubr.bf16.mxu0 0
    %397 = vmatmul.mubr.bf16.gmra.mxu0 %v316
    %v398 = vpop.f32.mrf.mxu0
    %v399 = vadd.f32 %v273, %v398
    %v400 = vpop.f32.mrf.mxu0
    %v401 = vpop.f32.mrf.mxu0
    %v402 = vadd.f32 %v273, %v401
    %v403 = vpop.f32.mrf.mxu0
    %404 = vmatprep.mubr.bf16.mxu0 0
    %405 = vmatmul.mubr.bf16.gmra.mxu0 %v319
    %v406 = vpop.f32.mrf.mxu0
    %v407 = vadd.f32 %v273, %v406
    %v408 = vpop.f32.mrf.mxu0
    %v409 = vpop.f32.mrf.mxu0
    %v410 = vadd.f32 %v273, %v409
    %v411 = vpop.f32.mrf.mxu0
    %412 = vmatprep.mubr.bf16.mxu0 0
    %413 = vmatmul.mubr.bf16.gmra.mxu0 %v322
    %v414 = vpop.f32.mrf.mxu0
    %v415 = vadd.f32 %v273, %v414
    %v416 = vpop.f32.mrf.mxu0
    %v417 = vpop.f32.mrf.mxu0
    %v418 = vadd.f32 %v273, %v417
    %v419 = vpop.f32.mrf.mxu0
    %420 = vdwg.mxu0
    %v421 = vmax.f32 %v359, 0.0
    %v422 = vmax.f32 %v362, 0.0
    %v423 = vmax.f32 %v367, 0.0
    %v424 = vmax.f32 %v370, 0.0
    %v425 = vmax.f32 %v375, 0.0
    %v426 = vmax.f32 %v378, 0.0
    %v427 = vmax.f32 %v383, 0.0
    %v428 = vmax.f32 %v386, 0.0
    %v429 = vmax.f32 %v391, 0.0
    %v430 = vmax.f32 %v394, 0.0
    %v431 = vmax.f32 %v399, 0.0
    %v432 = vmax.f32 %v402, 0.0
    %v433 = vmax.f32 %v407, 0.0
    %v434 = vmax.f32 %v410, 0.0
    %v435 = vmax.f32 %v415, 0.0
    %v436 = vmax.f32 %v418, 0.0
    %v437 = vpack.c.bf16 %v422, %v421
    %v438 = vpack.c.bf16 %v424, %v423
    %v439 = vpack.c.bf16 %v426, %v425
    %v440 = vpack.c.bf16 %v428, %v427
    %v441 = vpack.c.bf16 %v430, %v429
    %v442 = vpack.c.bf16 %v432, %v431
    %v443 = vpack.c.bf16 %v434, %v433
    %v444 = vpack.c.bf16 %v436, %v435
    %v445 = vld [vmem:[%s5] sm:$0xf]
    %v446 = vld [vmem:[%s5 + $0x4] sm:$0xf]
    %v447 = vld [vmem:[%s5 + $0x8] sm:$0xf]
    %v448 = vld [vmem:[%s5 + $0xc] sm:$0xf]
    %v449 = vld [vmem:[%s5 + $0x10] sm:$0xf]
    %v450 = vld [vmem:[%s5 + $0x14] sm:$0xf]
    %v451 = vld [vmem:[%s5 + $0x18] sm:$0xf]
    %v452 = vld [vmem:[%s5 + $0x1c] sm:$0xf]
    %v453 = vld [vmem:[%s6] sm:$0x1]
    %v455 = vlaneseq
    %v456 = vshrl.u32 %v455, 7
    %v457 = vsub.s32 0, %v456
    %v458 = vrot.slane %v453, %v457
    %v468 = vunpack.c.l.b16 %v445
    %v469 = vunpack.c.l.b16 %v446
    %v470 = vunpack.c.l.b16 %v447
    %v471 = vunpack.c.l.b16 %v448
    %v472 = vunpack.c.l.b16 %v449
    %v473 = vunpack.c.l.b16 %v450
    %v474 = vunpack.c.l.b16 %v451
    %v475 = vunpack.c.l.b16 %v452
    %v476 = vpack.c.b16 %v469, %v468
    %v477 = vpack.c.b16 %v471, %v470
    %v478 = vpack.c.b16 %v473, %v472
    %v479 = vpack.c.b16 %v475, %v474
    %v485 = vsel %vm299, %v437, 0
    %v488 = vsel %vm299, %v438, 0
    %v491 = vsel %vm299, %v439, 0
    %v494 = vsel %vm299, %v440, 0
    %v497 = vsel %vm299, %v441, 0
    %v500 = vsel %vm299, %v442, 0
    %v503 = vsel %vm299, %v443, 0
    %v506 = vsel %vm299, %v444, 0
    %508 = vmatprep.subr.bf16.mxu0 0
    %509 = vmatpush1.bf16.msra.mxu0 0
    %510 = vmatprep.subr.bf16.mxu0 0
    %511 = vmatpush1.bf16.msra.mxu0 0
    %512 = vmatprep.subr.bf16.mxu0 0
    %513 = vmatpush1.bf16.msra.mxu0 0
    %514 = vmatprep.subr.bf16.mxu0 0
    %515 = vmatpush1.bf16.msra.mxu0 0
    %516 = vmatprep.subr.bf16.mxu0 0
    %517 = vmatpush1.bf16.msra.mxu0 %v479
    %518 = vmatprep.subr.bf16.mxu0 0
    %519 = vmatpush1.bf16.msra.mxu0 %v478
    %520 = vmatprep.subr.bf16.mxu0 0
    %521 = vmatpush1.bf16.msra.mxu0 %v477
    %522 = vmatprep.subr.bf16.mxu0 0
    %523 = vmatpush1.bf16.msra.mxu0 %v476
    %524 = vmatprep.subr.bf16.mxu0 0
    %525 = vmatpush2.bf16.msra.mxu0 0
    %526 = vmatprep.subr.bf16.mxu0 0
    %527 = vmatpush2.bf16.msra.mxu0 0
    %528 = vmatprep.subr.bf16.mxu0 0
    %529 = vmatpush2.bf16.msra.mxu0 0
    %530 = vmatprep.subr.bf16.mxu0 0
    %531 = vmatpush2.bf16.msra.mxu0 0
    %532 = vmatprep.subr.bf16.mxu0 0
    %533 = vmatpush2.bf16.msra.mxu0 0
    %534 = vmatprep.subr.bf16.mxu0 0
    %535 = vmatpush2.bf16.msra.mxu0 0
    %536 = vmatprep.subr.bf16.mxu0 0
    %537 = vmatpush2.bf16.msra.mxu0 0
    %538 = vmatprep.subr.bf16.mxu0 0
    %539 = vmatpush2.bf16.msra.mxu0 0
    %540 = vmatprep.mubr.bf16.mxu0 0
    %541 = vmatmul.mubr.bf16.gmra.mxu0 %v485
    %v542 = vpop.f32.mrf.mxu0
    %v543 = vadd.f32 %v458, %v542
    %v544 = vpop.f32.mrf.mxu0
    %v545 = vpop.f32.mrf.mxu0
    %v546 = vadd.f32 %v458, %v545
    %v547 = vpop.f32.mrf.mxu0
    %548 = vmatprep.mubr.bf16.mxu0 0
    %549 = vmatmul.mubr.bf16.gmra.mxu0 %v488
    %v550 = vpop.f32.mrf.mxu0
    %v551 = vadd.f32 %v458, %v550
    %v552 = vpop.f32.mrf.mxu0
    %v553 = vpop.f32.mrf.mxu0
    %v554 = vadd.f32 %v458, %v553
    %v555 = vpop.f32.mrf.mxu0
    %556 = vmatprep.mubr.bf16.mxu0 0
    %557 = vmatmul.mubr.bf16.gmra.mxu0 %v491
    %v558 = vpop.f32.mrf.mxu0
    %v559 = vadd.f32 %v458, %v558
    %v560 = vpop.f32.mrf.mxu0
    %v561 = vpop.f32.mrf.mxu0
    %v562 = vadd.f32 %v458, %v561
    %v563 = vpop.f32.mrf.mxu0
    %564 = vmatprep.mubr.bf16.mxu0 0
    %565 = vmatmul.mubr.bf16.gmra.mxu0 %v494
    %v566 = vpop.f32.mrf.mxu0
    %v567 = vadd.f32 %v458, %v566
    %v568 = vpop.f32.mrf.mxu0
    %v569 = vpop.f32.mrf.mxu0
    %v570 = vadd.f32 %v458, %v569
    %v571 = vpop.f32.mrf.mxu0
    %572 = vmatprep.mubr.bf16.mxu0 0
    %573 = vmatmul.mubr.bf16.gmra.mxu0 %v497
    %v574 = vpop.f32.mrf.mxu0
    %v575 = vadd.f32 %v458, %v574
    %v576 = vpop.f32.mrf.mxu0
    %v577 = vpop.f32.mrf.mxu0
    %v578 = vadd.f32 %v458, %v577
    %v579 = vpop.f32.mrf.mxu0
    %580 = vmatprep.mubr.bf16.mxu0 0
    %581 = vmatmul.mubr.bf16.gmra.mxu0 %v500
    %v582 = vpop.f32.mrf.mxu0
    %v583 = vadd.f32 %v458, %v582
    %v584 = vpop.f32.mrf.mxu0
    %v585 = vpop.f32.mrf.mxu0
    %v586 = vadd.f32 %v458, %v585
    %v587 = vpop.f32.mrf.mxu0
    %588 = vmatprep.mubr.bf16.mxu0 0
    %589 = vmatmul.mubr.bf16.gmra.mxu0 %v503
    %v590 = vpop.f32.mrf.mxu0
    %v591 = vadd.f32 %v458, %v590
    %v592 = vpop.f32.mrf.mxu0
    %v593 = vpop.f32.mrf.mxu0
    %v594 = vadd.f32 %v458, %v593
    %v595 = vpop.f32.mrf.mxu0
    %596 = vmatprep.mubr.bf16.mxu0 0
    %597 = vmatmul.mubr.bf16.gmra.mxu0 %v506
    %v598 = vpop.f32.mrf.mxu0
    %v599 = vadd.f32 %v458, %v598
    %v600 = vpop.f32.mrf.mxu0
    %v601 = vpop.f32.mrf.mxu0
    %v602 = vadd.f32 %v458, %v601
    %v603 = vpop.f32.mrf.mxu0
    %604 = vdwg.mxu0
    %v605 = vmax.f32 %v543, 0.0
    %v606 = vmax.f32 %v546, 0.0
    %v607 = vmax.f32 %v551, 0.0
    %v608 = vmax.f32 %v554, 0.0
    %v609 = vmax.f32 %v559, 0.0
    %v610 = vmax.f32 %v562, 0.0
    %v611 = vmax.f32 %v567, 0.0
    %v612 = vmax.f32 %v570, 0.0
    %v613 = vmax.f32 %v575, 0.0
    %v614 = vmax.f32 %v578, 0.0
    %v615 = vmax.f32 %v583, 0.0
    %v616 = vmax.f32 %v586, 0.0
    %v617 = vmax.f32 %v591, 0.0
    %v618 = vmax.f32 %v594, 0.0
    %v619 = vmax.f32 %v599, 0.0
    %v620 = vmax.f32 %v602, 0.0
    %v621 = vld [vmem:[%s7] sm:$0x1]
    %v623 = vlaneseq
    %v624 = vshrl.u32 %v623, 7
    %v625 = vsub.s32 0, %v624
    %v626 = vrot.slane %v621, %v625
    %v628 = vmul.f32 %v605, %v626
    %v629 = vmul.f32 %v606, %v626
    %v630 = vmul.f32 %v607, %v626
    %v631 = vmul.f32 %v608, %v626
    %v632 = vmul.f32 %v609, %v626
    %v633 = vmul.f32 %v610, %v626
    %v634 = vmul.f32 %v611, %v626
    %v635 = vmul.f32 %v612, %v626
    %v636 = vmul.f32 %v613, %v626
    %v637 = vmul.f32 %v614, %v626
    %v638 = vmul.f32 %v615, %v626
    %v639 = vmul.f32 %v616, %v626
    %v640 = vmul.f32 %v617, %v626
    %v641 = vmul.f32 %v618, %v626
    %v642 = vmul.f32 %v619, %v626
    %v643 = vmul.f32 %v620, %v626
    %v644 = vsel %vm299, %v628, 0.0
    %645 = vadd.xlane.f32.xlu0 %v644
    %v646 = vpop.xlane.xlu0 %645
    %v647 = vsel %vm299, %v629, 0.0
    %648 = vadd.xlane.f32.xlu0 %v647
    %v649 = vpop.xlane.xlu0 %648
    %v650 = vsel %vm299, %v630, 0.0
    %651 = vadd.xlane.f32.xlu0 %v650
    %v652 = vpop.xlane.xlu0 %651
    %v653 = vsel %vm299, %v631, 0.0
    %654 = vadd.xlane.f32.xlu0 %v653
    %v655 = vpop.xlane.xlu0 %654
    %v656 = vsel %vm299, %v632, 0.0
    %657 = vadd.xlane.f32.xlu0 %v656
    %v658 = vpop.xlane.xlu0 %657
    %v659 = vsel %vm299, %v633, 0.0
    %660 = vadd.xlane.f32.xlu0 %v659
    %v661 = vpop.xlane.xlu0 %660
    %v662 = vsel %vm299, %v634, 0.0
    %663 = vadd.xlane.f32.xlu0 %v662
    %v664 = vpop.xlane.xlu0 %663
    %v665 = vsel %vm299, %v635, 0.0
    %666 = vadd.xlane.f32.xlu0 %v665
    %v667 = vpop.xlane.xlu0 %666
    %v668 = vsel %vm299, %v636, 0.0
    %669 = vadd.xlane.f32.xlu0 %v668
    %v670 = vpop.xlane.xlu0 %669
    %v671 = vsel %vm299, %v637, 0.0
    %672 = vadd.xlane.f32.xlu0 %v671
    %v673 = vpop.xlane.xlu0 %672
    %v674 = vsel %vm299, %v638, 0.0
    %675 = vadd.xlane.f32.xlu0 %v674
    %v676 = vpop.xlane.xlu0 %675
    %v677 = vsel %vm299, %v639, 0.0
    %678 = vadd.xlane.f32.xlu0 %v677
    %v679 = vpop.xlane.xlu0 %678
    %v680 = vsel %vm299, %v640, 0.0
    %681 = vadd.xlane.f32.xlu0 %v680
    %v682 = vpop.xlane.xlu0 %681
    %v683 = vsel %vm299, %v641, 0.0
    %684 = vadd.xlane.f32.xlu0 %v683
    %v685 = vpop.xlane.xlu0 %684
    %v686 = vsel %vm299, %v642, 0.0
    %687 = vadd.xlane.f32.xlu0 %v686
    %v688 = vpop.xlane.xlu0 %687
    %v689 = vsel %vm299, %v643, 0.0
    %690 = vadd.xlane.f32.xlu0 %v689
    %v691 = vpop.xlane.xlu0 %690
    %s692 = sld [smem:[#allocation2]]
    %v693 = vstv %s692
    %v694 = vadd.f32 %v646, %v693
    %v695 = vadd.f32 %v649, %v693
    %v696 = vadd.f32 %v652, %v693
    %v697 = vadd.f32 %v655, %v693
    %v698 = vadd.f32 %v658, %v693
    %v699 = vadd.f32 %v661, %v693
    %v700 = vadd.f32 %v664, %v693
    %v701 = vadd.f32 %v667, %v693
    %v702 = vadd.f32 %v670, %v693
    %v703 = vadd.f32 %v673, %v693
    %v704 = vadd.f32 %v676, %v693
    %v705 = vadd.f32 %v679, %v693
    %v706 = vadd.f32 %v682, %v693
    %v707 = vadd.f32 %v685, %v693
    %v708 = vadd.f32 %v688, %v693
    %v709 = vadd.f32 %v691, %v693
    %v710 = vmul.f32 %v694, 0.5
    %v711 = vmul.f32 %v695, 0.5
    %v712 = vmul.f32 %v696, 0.5
    %v713 = vmul.f32 %v697, 0.5
    %v714 = vmul.f32 %v698, 0.5
    %v715 = vmul.f32 %v699, 0.5
    %v716 = vmul.f32 %v700, 0.5
    %v717 = vmul.f32 %v701, 0.5
    %v718 = vmul.f32 %v702, 0.5
    %v719 = vmul.f32 %v703, 0.5
    %v720 = vmul.f32 %v704, 0.5
    %v721 = vmul.f32 %v705, 0.5
    %v722 = vmul.f32 %v706, 0.5
    %v723 = vmul.f32 %v707, 0.5
    %v724 = vmul.f32 %v708, 0.5
    %v725 = vmul.f32 %v709, 0.5
    %v726 = vtanh.pop %v710
    %v727 = vtanh.pop %v711
    %v728 = vtanh.pop %v712
    %v729 = vtanh.pop %v713
    %v730 = vtanh.pop %v714
    %v731 = vtanh.pop %v715
    %v732 = vtanh.pop %v716
    %v733 = vtanh.pop %v717
    %v734 = vtanh.pop %v718
    %v735 = vtanh.pop %v719
    %v736 = vtanh.pop %v720
    %v737 = vtanh.pop %v721
    %v738 = vtanh.pop %v722
    %v739 = vtanh.pop %v723
    %v740 = vtanh.pop %v724
    %v741 = vtanh.pop %v725
    %v742 = vadd.f32 %v726, 1.0
    %v743 = vadd.f32 %v727, 1.0
    %v744 = vadd.f32 %v728, 1.0
    %v745 = vadd.f32 %v729, 1.0
    %v746 = vadd.f32 %v730, 1.0
    %v747 = vadd.f32 %v731, 1.0
    %v748 = vadd.f32 %v732, 1.0
    %v749 = vadd.f32 %v733, 1.0
    %v750 = vadd.f32 %v734, 1.0
    %v751 = vadd.f32 %v735, 1.0
    %v752 = vadd.f32 %v736, 1.0
    %v753 = vadd.f32 %v737, 1.0
    %v754 = vadd.f32 %v738, 1.0
    %v755 = vadd.f32 %v739, 1.0
    %v756 = vadd.f32 %v740, 1.0
    %v757 = vadd.f32 %v741, 1.0
    %v758 = vmul.f32 %v742, 0.5
    %v759 = vmul.f32 %v743, 0.5
    %v760 = vmul.f32 %v744, 0.5
    %v761 = vmul.f32 %v745, 0.5
    %v762 = vmul.f32 %v746, 0.5
    %v763 = vmul.f32 %v747, 0.5
    %v764 = vmul.f32 %v748, 0.5
    %v765 = vmul.f32 %v749, 0.5
    %v766 = vmul.f32 %v750, 0.5
    %v767 = vmul.f32 %v751, 0.5
    %v768 = vmul.f32 %v752, 0.5
    %v769 = vmul.f32 %v753, 0.5
    %v770 = vmul.f32 %v754, 0.5
    %v771 = vmul.f32 %v755, 0.5
    %v772 = vmul.f32 %v756, 0.5
    %v773 = vmul.f32 %v757, 0.5
    %v790 = vlaneseq
    %v791 = vand.u32 %v790, 127
    %v792 = vlaneseq
    %v793 = vshrl.u32 %v792, 7
    %v794 = vsub.s32 %v791, %v793
    %v795 = vrot.slane %v758, %v794
    %v796 = vadd.s32 %v791, 4294967288
    %v797 = vlaneseq
    %v798 = vshrl.u32 %v797, 7
    %v799 = vsub.s32 %v796, %v798
    %v800 = vrot.slane %v759, %v799
    %vm801 = vcmask 130112
    %v802 = vsel %vm801, %v800, %v795
    %v803 = vadd.s32 %v791, 4294967280
    %v804 = vlaneseq
    %v805 = vshrl.u32 %v804, 7
    %v806 = vsub.s32 %v803, %v805
    %v807 = vrot.slane %v760, %v806
    %vm808 = vcmask 195712
    %v809 = vsel %vm808, %v807, %v802
    %v810 = vadd.s32 %v791, 4294967272
    %v811 = vlaneseq
    %v812 = vshrl.u32 %v811, 7
    %v813 = vsub.s32 %v810, %v812
    %v814 = vrot.slane %v761, %v813
    %vm815 = vcmask 261312
    %v816 = vsel %vm815, %v814, %v809
    %v817 = vadd.s32 %v791, 4294967264
    %v818 = vlaneseq
    %v819 = vshrl.u32 %v818, 7
    %v820 = vsub.s32 %v817, %v819
    %v821 = vrot.slane %v762, %v820
    %vm822 = vcmask 326912
    %v823 = vsel %vm822, %v821, %v816
    %v824 = vadd.s32 %v791, 4294967256
    %v825 = vlaneseq
    %v826 = vshrl.u32 %v825, 7
    %v827 = vsub.s32 %v824, %v826
    %v828 = vrot.slane %v763, %v827
    %vm829 = vcmask 392512
    %v830 = vsel %vm829, %v828, %v823
    %v831 = vadd.s32 %v791, 4294967248
    %v832 = vlaneseq
    %v833 = vshrl.u32 %v832, 7
    %v834 = vsub.s32 %v831, %v833
    %v835 = vrot.slane %v764, %v834
    %vm836 = vcmask 458112
    %v837 = vsel %vm836, %v835, %v830
    %v838 = vadd.s32 %v791, 4294967240
    %v839 = vlaneseq
    %v840 = vshrl.u32 %v839, 7
    %v841 = vsub.s32 %v838, %v840
    %v842 = vrot.slane %v765, %v841
    %vm843 = vcmask 523712
    %v844 = vsel %vm843, %v842, %v837
    %v845 = vadd.s32 %v791, 4294967232
    %v846 = vlaneseq
    %v847 = vshrl.u32 %v846, 7
    %v848 = vsub.s32 %v845, %v847
    %v849 = vrot.slane %v766, %v848
    %vm850 = vcmask 589312
    %v851 = vsel %vm850, %v849, %v844
    %v852 = vadd.s32 %v791, 4294967224
    %v853 = vlaneseq
    %v854 = vshrl.u32 %v853, 7
    %v855 = vsub.s32 %v852, %v854
    %v856 = vrot.slane %v767, %v855
    %vm857 = vcmask 654912
    %v858 = vsel %vm857, %v856, %v851
    %v859 = vadd.s32 %v791, 4294967216
    %v860 = vlaneseq
    %v861 = vshrl.u32 %v860, 7
    %v862 = vsub.s32 %v859, %v861
    %v863 = vrot.slane %v768, %v862
    %vm864 = vcmask 720512
    %v865 = vsel %vm864, %v863, %v858
    %v866 = vadd.s32 %v791, 4294967208
    %v867 = vlaneseq
    %v868 = vshrl.u32 %v867, 7
    %v869 = vsub.s32 %v866, %v868
    %v870 = vrot.slane %v769, %v869
    %vm871 = vcmask 786112
    %v872 = vsel %vm871, %v870, %v865
    %v873 = vadd.s32 %v791, 4294967200
    %v874 = vlaneseq
    %v875 = vshrl.u32 %v874, 7
    %v876 = vsub.s32 %v873, %v875
    %v877 = vrot.slane %v770, %v876
    %vm878 = vcmask 851712
    %v879 = vsel %vm878, %v877, %v872
    %v880 = vadd.s32 %v791, 4294967192
    %v881 = vlaneseq
    %v882 = vshrl.u32 %v881, 7
    %v883 = vsub.s32 %v880, %v882
    %v884 = vrot.slane %v771, %v883
    %vm885 = vcmask 917312
    %v886 = vsel %vm885, %v884, %v879
    %v887 = vadd.s32 %v791, 4294967184
    %v888 = vlaneseq
    %v889 = vshrl.u32 %v888, 7
    %v890 = vsub.s32 %v887, %v889
    %v891 = vrot.slane %v772, %v890
    %vm892 = vcmask 982912
    %v893 = vsel %vm892, %v891, %v886
    %v894 = vadd.s32 %v791, 4294967176
    %v895 = vlaneseq
    %v896 = vshrl.u32 %v895, 7
    %v897 = vsub.s32 %v894, %v896
    %v898 = vrot.slane %v773, %v897
    %vm899 = vcmask 1048512
    %v900 = vsel %vm899, %v898, %v893
    %902 = vst [vmem:[#allocation3] sm:$0x1] %v900
    // Predicated region
    $region38: #{tpu_custom_call.1} parent=1 // pred_check
      _
    $region39: #{tpu_custom_call.1} parent=1 // pred_check_branch
      %904 = sbr.rel (0) target = $region41
    $region40: #{tpu_custom_call.1} parent=1 // pred_region
      %s906 = ssub.s32 16, 16
      %907 = vsyncadd [#allocation4], %s906
      %s909 = sshll.u32 [#allocation3], 4
      %s910 = int_to_ptr.vmem [resolvable:$true] %s909
      %912 = dma.vmem_to_hbm [thread:$0]  %s910, 16, %s9, [#allocation4]
    $region41: #{tpu_custom_call.1} parent=1 // pred_fallthru
      _
    // Predicated region
    $region42: #{tpu_custom_call.1} parent=1 // pred_check
      _
    $region43: #{tpu_custom_call.1} parent=1 // pred_check_branch
      %914 = sbr.rel (0) target = $region45
    $region44: #{tpu_custom_call.1} parent=1 // pred_region
      %915 = dma.done [#allocation4], 16
    $region45: #{tpu_custom_call.1} parent=1 // pred_fallthru
      _
    %916 = vsyncpa [#allocation4], 1

</llo_original>
